<compile_context>
chip_gen: v7x
topology: tpu7x:2x2x1
jax: 0.10.0
libtpu: 0.0.40
codegen_flags: <defaults>
</compile_context>

<pallas_src>
import functools

import jax
import jax.numpy as jnp
from jax.experimental import pallas as pl
from jax.experimental.pallas import tpu as pltpu

_MiB = 1024 * 1024


def _round_up(x, m):
    return -(-x // m) * m


def _sublane_packing(dtype):
    """Rows per vreg along the sublane axis for this dtype."""
    itemsize = jnp.dtype(dtype).itemsize
    if itemsize >= 4:
        return 8
    if itemsize == 2:
        return 16
    return 32


def _tpu_generation_config():
    """Generation-aware tiling config: VMEM budget / limit, buffering, TCs."""
    kind = ""
    vmem_cap = None
    try:
        kind = (getattr(jax.devices()[0], "device_kind", "") or "").lower()
    except Exception:
        pass
    try:
        vmem_cap = int(pltpu.get_tpu_info().vmem_capacity_bytes)
    except Exception:
        vmem_cap = None

    is_v7 = ("v7" in kind) or (vmem_cap is not None and vmem_cap <= 64 * _MiB)
    is_v6 = "v6" in kind
    is_v5e = ("v5e" in kind) or ("v5 lite" in kind) or ("v5litepod" in kind)

    if is_v7:
        # 64 MiB physical VMEM per TC -> keep working set ~24 MiB, limit < 48.
        return dict(budget=24 * _MiB, vmem_limit=44 * _MiB, in_bufs=3, num_tc=2)
    if is_v6:
        # 128 MiB physical; raise above the 32 MiB scoped default explicitly.
        return dict(budget=28 * _MiB, vmem_limit=48 * _MiB, in_bufs=3, num_tc=1)
    if is_v5e:
        return dict(budget=14 * _MiB, vmem_limit=28 * _MiB, in_bufs=2, num_tc=1)
    # Unknown chip: stay inside the smallest scoped-VMEM default.
    return dict(budget=12 * _MiB, vmem_limit=24 * _MiB, in_bufs=2, num_tc=1)


def _rmsnorm_kernel(x_ref, w_ref, o_ref, *, eps):
    # x_ref: (tile_rows, H) input dtype; w_ref: (1, H) weight dtype;
    # o_ref: (tile_rows, H) output dtype (promote(input, weight) by default).
    x = x_ref[...]
    xf = x.astype(jnp.float32)
    variance = jnp.mean(xf * xf, axis=-1, keepdims=True)
    inv = jax.lax.rsqrt(variance + eps)
    # matches HF: hidden_states.to(input_dtype), then self.weight * hidden_states
    normed = (xf * inv).astype(x.dtype)
    o_ref[...] = (w_ref[...] * normed).astype(o_ref.dtype)


def qwen2_rmsnorm(hidden_states, weight, eps=1e-6, tile_rows=None,
                  cast_weight_to_input_dtype=False):
    """RMSNorm over the last axis. hidden_states: [..., H]; weight: [H]."""
    orig_shape = hidden_states.shape
    H = orig_shape[-1]
    rows = 1
    for d in orig_shape[:-1]:
        rows *= d

    if cast_weight_to_input_dtype:
        # Opt-in bandwidth mode: output stays in the activation dtype.
        # Slightly changes numerics vs the HF reference, hence not default.
        weight = weight.astype(hidden_states.dtype)

    x2d = hidden_states.reshape(rows, H)
    w2d = weight.reshape(1, H)
    out_dtype = jnp.promote_types(hidden_states.dtype, weight.dtype)

    cfg = _tpu_generation_config()
    packing = _sublane_packing(hidden_states.dtype)

    if tile_rows is None:
        in_bytes = jnp.dtype(hidden_states.dtype).itemsize
        out_bytes = jnp.dtype(out_dtype).itemsize
        # per row: N-deep buffered input + 2x buffered output + ~3 f32
        # temporaries (xf, square, normed) of headroom; weight is negligible.
        bytes_per_row = H * (cfg["in_bufs"] * in_bytes + 2 * out_bytes + 12)
        tile_rows = (cfg["budget"] // bytes_per_row) // packing * packing
        tile_rows = max(packing, min(2048, tile_rows))

    # never allocate a block bigger than the (packed-row-padded) problem.
    tile_rows = min(tile_rows, _round_up(rows, packing))

    # multi-TC chips (v7x): give each TensorCore >= 2 pipelined grid steps, but
    # only while the tile stays >= 256 rows.  Single-TC chips keep the biggest
    # tile (a forced split only adds sequential per-step overhead there).
    if cfg["num_tc"] >= 2 and rows >= 2 * cfg["num_tc"] * 256:
        cap = _round_up(-(-rows // (2 * cfg["num_tc"])), packing)
        tile_rows = min(tile_rows, max(cap, 256))

    tile_rows = max(packing, (tile_rows // packing) * packing)
    grid_rows = -(-rows // tile_rows)

    # 3-deep input buffering on high-bandwidth chips (v6e / v7x).
    in_spec = pl.BlockSpec((tile_rows, H), lambda i: (i, 0))
    if cfg["in_bufs"] > 2 and hasattr(pl, "Buffered"):
        try:
            in_spec = pl.BlockSpec((tile_rows, H), lambda i: (i, 0),
                                   pipeline_mode=pl.Buffered(cfg["in_bufs"]))
        except TypeError:
            pass  # older API without pipeline_mode: fall back to default depth

    out = pl.pallas_call(
        functools.partial(_rmsnorm_kernel, eps=eps),
        out_shape=jax.ShapeDtypeStruct((rows, H), out_dtype),
        grid_spec=pltpu.PrefetchScalarGridSpec(
            num_scalar_prefetch=0,
            grid=(grid_rows,),
            in_specs=[
                in_spec,
                pl.BlockSpec((1, H), lambda i: (0, 0)),  # resident weight
            ],
            out_specs=pl.BlockSpec((tile_rows, H), lambda i: (i, 0)),
        ),
        compiler_params=pltpu.CompilerParams(
            dimension_semantics=("parallel",),
            vmem_limit_bytes=cfg["vmem_limit"],
        ),
    )(x2d, w2d)

    return out.reshape(orig_shape)


def rmsnorm_ref(hidden_states, weight, eps=1e-6):
    input_dtype = hidden_states.dtype
    hs = hidden_states.astype(jnp.float32)
    variance = jnp.mean(hs * hs, axis=-1, keepdims=True)
    hs = hs * jax.lax.rsqrt(variance + eps)
    return weight * hs.astype(input_dtype)


if __name__ == "__main__":
    key = jax.random.PRNGKey(0)
    batch, seq, hidden = 2, 8, 128
    x = jax.random.normal(key, (batch, seq, hidden), dtype=jnp.float32)
    # deterministic param init, matching nn.Parameter(torch.ones(hidden_size))
    weight = jnp.ones((hidden,), dtype=jnp.float32)

    out = jax.block_until_ready(qwen2_rmsnorm(x, weight, eps=1e-6))
    ref = rmsnorm_ref(x, weight, eps=1e-6)
    assert out.shape == x.shape
    assert out.dtype == ref.dtype
    assert jnp.allclose(out, ref, atol=1e-5, rtol=1e-5)

    # mixed precision: bf16 activations + fp32 weight -> fp32 output
    # (HF promote_types semantics, round-to-input-dtype before weight mul).
    x_bf16 = x.astype(jnp.bfloat16)
    out_bf16 = jax.block_until_ready(qwen2_rmsnorm(x_bf16, weight, eps=1e-6))
    ref_bf16 = rmsnorm_ref(x_bf16, weight, eps=1e-6)
    assert out_bf16.dtype == ref_bf16.dtype
    assert jnp.allclose(out_bf16, ref_bf16, atol=1e-2, rtol=1e-2)

    # opt-in bandwidth mode: weight downcast, output stays bf16.
    out_fast = jax.block_until_ready(
        qwen2_rmsnorm(x_bf16, weight, eps=1e-6, cast_weight_to_input_dtype=True))
    ref_fast = rmsnorm_ref(x_bf16, weight.astype(jnp.bfloat16), eps=1e-6)
    assert out_fast.dtype == jnp.bfloat16
    assert jnp.allclose(out_fast.astype(jnp.float32),
                        ref_fast.astype(jnp.float32), atol=1e-2, rtol=1e-2)

    print("KERNEL_OK")
</pallas_src>

<mosaic_0001>
module attributes {stable_mosaic.version = 11 : i64} {
  func.func @_rmsnorm_kernel(%arg0: i32, %arg1: memref<16x128xf32, #tpu.memory_space<vmem>>, %arg2: memref<1x128xf32, #tpu.memory_space<vmem>>, %arg3: memref<16x128xf32, #tpu.memory_space<vmem>>) attributes {dimension_semantics = [#tpu.dimension_semantics<parallel>], iteration_bounds = array<i64: 1>, scalar_prefetch = 0 : i64, scratch_operands = 0 : i64, tpu.core_type = #tpu.core_type<tc>, window_params = [{transform_indices = @transform_0, window_bounds = array<i64: 16, 128>}, {pipeline_mode = #tpu.pipeline_mode<synchronous>, transform_indices = @transform_1, window_bounds = array<i64: 1, 128>}, {transform_indices = @transform_2, window_bounds = array<i64: 16, 128>}]} {
    %c0 = arith.constant 0 : index
    %c0_0 = arith.constant 0 : index
    %0 = vector.load %arg1[%c0, %c0_0] : memref<16x128xf32, #tpu.memory_space<vmem>>, vector<16x128xf32>
    %1 = arith.mulf %0, %0 : vector<16x128xf32>
    %cst = arith.constant dense<0.000000e+00> : vector<16xf32>
    %2 = vector.multi_reduction <add>, %1, %cst [1] : vector<16x128xf32> to vector<16xf32>
    %3 = vector.shape_cast %2 : vector<16xf32> to vector<16x1xf32>
    %cst_1 = arith.constant 1.280000e+02 : f32
    %4 = vector.broadcast %cst_1 : f32 to vector<16x1xf32>
    %5 = arith.divf %3, %4 : vector<16x1xf32>
    %cst_2 = arith.constant 9.99999997E-7 : f32
    %6 = vector.broadcast %cst_2 : f32 to vector<16x1xf32>
    %7 = arith.addf %5, %6 : vector<16x1xf32>
    %8 = math.rsqrt %7 : vector<16x1xf32>
    %9 = vector.broadcast %8 : vector<16x1xf32> to vector<16x128xf32>
    %10 = arith.mulf %0, %9 : vector<16x128xf32>
    %c0_3 = arith.constant 0 : index
    %c0_4 = arith.constant 0 : index
    %11 = vector.load %arg2[%c0_3, %c0_4] : memref<1x128xf32, #tpu.memory_space<vmem>>, vector<1x128xf32>
    %12 = vector.broadcast %11 : vector<1x128xf32> to vector<16x128xf32>
    %13 = arith.mulf %12, %10 : vector<16x128xf32>
    %c0_5 = arith.constant 0 : index
    %c0_6 = arith.constant 0 : index
    %14 = vector.load %arg3[%c0_5, %c0_6] : memref<16x128xf32, #tpu.memory_space<vmem>>, vector<16x128xf32>
    tpu.vector_store %arg3[%c0_5, %c0_6], %13 {strides = array<i32>} : memref<16x128xf32, #tpu.memory_space<vmem>>, vector<16x128xf32>,
    return
  }
  func.func @transform_0(%arg0: i32) -> (i32, i32) {
    %c0_i32 = arith.constant 0 : i32
    %c0_i32_0 = arith.constant 0 : i32
    return %arg0, %c0_i32 : i32, i32
  }
  func.func @transform_1(%arg0: i32) -> (i32, i32) {
    %c0_i32 = arith.constant 0 : i32
    %c0_i32_0 = arith.constant 0 : i32
    %c0_i32_1 = arith.constant 0 : i32
    return %c0_i32, %c0_i32_0 : i32, i32
  }
  func.func @transform_2(%arg0: i32) -> (i32, i32) {
    %c0_i32 = arith.constant 0 : i32
    %c0_i32_0 = arith.constant 0 : i32
    return %arg0, %c0_i32 : i32, i32
  }
}

</mosaic_0001>

<llo_original>
// kernel: tpu_custom_call.1
$region0: #{tpu_custom_call.1}
  #allocation0 [shape = 'u32[]', space=smem, size = 0x4, offset = 0x4, fixed_abs, tag = 'smem constant byte address 0x4 - core index']
  #allocation1 [shape = 'u32[144,128]{1,0:T(1,128)}', space=vmem, size = 0x12000, scoped, tag = 'internal scratch']
  %s0 = inlined_call_operand.hbm [shape: f32[16,128], index: 0, kind: input, shape index: {}]
  %s1 = inlined_call_operand.vmem [shape: f32[1,128], index: 1, kind: input, shape index: {}]
  %s2 = inlined_call_operand.hbm [shape: f32[16,128], index: 2, kind: output, shape index: {}]
  %s3 = sld [smem:[#allocation0]]
  $region22: #{tpu_custom_call.1} parent=0
    _
  %s5 = ssub.s32 1, %s3
  %s6 = scalar_select 0, %s5, %s3
  $region1: #{tpu_custom_call.1} parent=0
    #allocation2 [shape = 'u8[8192]{0}', space=vmem, size = 0x2000, scoped, tag = 'input window, operand 0, single buffered']
    #allocation3 [shape = 's32[1]{0}', space=sflag, size = 0x4, scoped, tag = 'scoped memory for tpu_custom_call.1']
    #allocation4 [shape = 's32[1]{0}', space=sflag, size = 0x4, scoped, tag = 'scoped memory for tpu_custom_call.1']
    #allocation5 [shape = 'u8[8192]{0}', space=vmem, size = 0x2000, scoped, tag = 'output window, operand 0, single buffered']
    %7 = vsyncpa [#allocation3], 0
    %8 = vsyncpa [#allocation4], 0
    // Predicated region
    $region2: #{tpu_custom_call.1} parent=1 // pred_check
      _
    $region3: #{tpu_custom_call.1} parent=1 // pred_check_branch
      %10 = sbr.rel (0) target = $region5
    $region4: #{tpu_custom_call.1} parent=1 // pred_region
      %s12 = ssub.s32 256, 256
      %13 = vsyncadd [#allocation3], %s12
      %s14 = sshll.u32 [#allocation2], 4
      %s15 = int_to_ptr.vmem [resolvable:$true] %s14
      %20 = dma.hbm_to_vmem [thread:$0]  %s0, 256, %s15, [#allocation3], 128, 128, 8
    $region5: #{tpu_custom_call.1} parent=1 // pred_fallthru
      _
    // Predicated region
    $region6: #{tpu_custom_call.1} parent=1 // pred_check
      _
    $region7: #{tpu_custom_call.1} parent=1 // pred_check_branch
      %22 = sbr.rel (0) target = $region9
    $region8: #{tpu_custom_call.1} parent=1 // pred_region
      _
    $region9: #{tpu_custom_call.1} parent=1 // pred_fallthru
      _
    // Predicated region
    $region10: #{tpu_custom_call.1} parent=1 // pred_check
      _
    $region11: #{tpu_custom_call.1} parent=1 // pred_check_branch
      %24 = sbr.rel (0) target = $region13
    $region12: #{tpu_custom_call.1} parent=1 // pred_region
      %25 = dma.done [#allocation3], 256
    $region13: #{tpu_custom_call.1} parent=1 // pred_fallthru
      _
    %v26 = vld [vmem:[#allocation2] sm:$0xff]
    %v27 = vld [vmem:[#allocation2 + $0x8] sm:$0xff]
    %v28 = vmul.f32 %v26, %v26
    %v29 = vmul.f32 %v27, %v27
    %30 = vadd.xlane.f32.xlu0 %v28
    %v31 = vpop.xlane.xlu0 %30
    %32 = vadd.xlane.f32.xlu0 %v29
    %v33 = vpop.xlane.xlu0 %32
    %v34 = vrcp.pop 128.0
    %v35 = vmul.f32 %v31, %v34
    %v36 = vmul.f32 %v33, %v34
    %v37 = vadd.f32 %v35, 1e-06
    %v38 = vadd.f32 %v36, 1e-06
    %v39 = vrsqrt.pop %v37
    %v40 = vrsqrt.pop %v38
    %v41 = vmul.f32 %v26, %v39
    %v42 = vmul.f32 %v27, %v40
    %v43 = vld [vmem:[%s1] sm:$0x1]
    %v45 = vlaneseq
    %v46 = vshrl.u32 %v45, 7
    %v47 = vsub.s32 0, %v46
    %v48 = vrot.slane %v43, %v47
    %v50 = vmul.f32 %v48, %v41
    %v51 = vmul.f32 %v48, %v42
    %52 = vst [vmem:[#allocation5] sm:$0xff] %v50
    %53 = vst [vmem:[#allocation5 + $0x8] sm:$0xff] %v51
    // Predicated region
    $region14: #{tpu_custom_call.1} parent=1 // pred_check
      _
    $region15: #{tpu_custom_call.1} parent=1 // pred_check_branch
      %55 = sbr.rel (0) target = $region17
    $region16: #{tpu_custom_call.1} parent=1 // pred_region
      %s57 = ssub.s32 256, 256
      %58 = vsyncadd [#allocation4], %s57
      %s59 = sshll.u32 [#allocation5], 4
      %s60 = int_to_ptr.vmem [resolvable:$true] %s59
      %65 = dma.vmem_to_hbm [thread:$0]  %s60, 256, %s2, [#allocation4], 128, 128, 8
    $region17: #{tpu_custom_call.1} parent=1 // pred_fallthru
      _
    // Predicated region
    $region18: #{tpu_custom_call.1} parent=1 // pred_check
      _
    $region19: #{tpu_custom_call.1} parent=1 // pred_check_branch
      %67 = sbr.rel (0) target = $region21
    $region20: #{tpu_custom_call.1} parent=1 // pred_region
      %68 = dma.done [#allocation4], 256
    $region21: #{tpu_custom_call.1} parent=1 // pred_fallthru
      _
    %69 = vsyncpa [#allocation3], 1
    %70 = vsyncpa [#allocation4], 1

</llo_original>
